<compile_context>
chip_gen: v7x
topology: tpu7x:2x2x1
jax: 0.10.0
libtpu: 0.0.40
codegen_flags: <defaults>
</compile_context>

<pallas_src>
import functools

import jax
import jax.numpy as jnp
from jax.experimental import pallas as pl
from jax.experimental.pallas import tpu as pltpu


def _round_up(x, m):
    return ((x + m - 1) // m) * m


# --------------------------------------------------------------------------- #
# Kernel
# --------------------------------------------------------------------------- #
def _ffn_ln_kernel(x_ref, w1_ref, b1_ref, w2_ref, lnp_ref, o_ref, acc_ref,
                   *, eps, d_model_true, mm_dtype):
    """Grid = (row_tiles, d_ff_tiles).  Per (i, k):
         acc[i] += relu(x[i] @ W1[:, k] + b1[k]) @ W2[k, :]
       and on the last k step:
         out[i] = LayerNorm(acc[i] + b2 + x[i])
    """
    k = pl.program_id(1)
    nk = pl.num_programs(1)
    mm = jnp.dtype(mm_dtype)

    x = x_ref[...]                                        # (tm, d_model_pad)
    x_mm = x if x.dtype == mm else x.astype(mm)

    @pl.when(k == 0)
    def _():
        acc_ref[...] = jnp.zeros_like(acc_ref)

    # conv1 (kernel_size=1) chunk -> (tm, kf), f32 accumulation on the MXU.
    h = jnp.dot(x_mm, w1_ref[...], preferred_element_type=jnp.float32)
    h = jnp.maximum(h + b1_ref[...].astype(jnp.float32), 0.0)
    # conv2 chunk, accumulated into the resident f32 accumulator.
    acc_ref[...] += jnp.dot(h.astype(mm), w2_ref[...],
                            preferred_element_type=jnp.float32)

    @pl.when(k == nk - 1)
    def _():
        lnp = lnp_ref[...].astype(jnp.float32)            # (3, d_model_pad)
        b2, gamma, beta = lnp[0:1, :], lnp[1:2, :], lnp[2:3, :]
        y = acc_ref[...] + b2 + x.astype(jnp.float32)     # bias + residual (f32)

        dmp = y.shape[-1]
        inv_d = 1.0 / d_model_true
        if dmp != d_model_true:
            # Padded lanes of x / weights / biases are zero, so the raw sum is
            # already the true-lane sum; only the centered values need masking
            # so the padded lanes don't dilute the variance.
            lane = jax.lax.broadcasted_iota(jnp.int32, (1, dmp), 1)
            mask = lane < d_model_true
            mean = jnp.sum(y, axis=-1, keepdims=True) * inv_d
            yc = y - mean
            yc_m = jnp.where(mask, yc, 0.0)
            var = jnp.sum(yc_m * yc_m, axis=-1, keepdims=True) * inv_d
        else:
            mean = jnp.mean(y, axis=-1, keepdims=True)
            yc = y - mean
            var = jnp.mean(yc * yc, axis=-1, keepdims=True)

        inv = jax.lax.rsqrt(var + eps)
        o_ref[...] = (yc * inv * gamma + beta).astype(o_ref.dtype)


# --------------------------------------------------------------------------- #
# Parameter preparation (hoistable: cache the result across layer calls)
# --------------------------------------------------------------------------- #
def prepare_ffn_params(w1, b1, w2, b2, gamma, beta, *, d_model_pad, d_ff_pad,
                       matmul_dtype=jnp.bfloat16):
    """Transpose / cast / lane-pad the Conv1d weights once.

    Callers that invoke the FFN repeatedly should call this once and pass the
    result via `prepared_params=` to avoid re-materializing both weight
    matrices in HBM on every call.
    """
    d_ff, d_model = w1.shape[0], w1.shape[1]
    w1_m = jnp.transpose(w1[:, :, 0]).astype(matmul_dtype)       # (d_model, d_ff)
    w2_m = jnp.transpose(w2[:, :, 0]).astype(matmul_dtype)       # (d_ff, d_model)
    w1_m = jnp.pad(w1_m, ((0, d_model_pad - d_model), (0, d_ff_pad - d_ff)))
    w2_m = jnp.pad(w2_m, ((0, d_ff_pad - d_ff), (0, d_model_pad - d_model)))
    b1_r = jnp.pad(b1.astype(jnp.float32), (0, d_ff_pad - d_ff)).reshape(1, d_ff_pad)
    lnp = jnp.stack([b2, gamma, beta], axis=0).astype(jnp.float32)
    lnp = jnp.pad(lnp, ((0, 0), (0, d_model_pad - d_model)))     # (3, d_model_pad)
    return w1_m, b1_r, w2_m, lnp


# --------------------------------------------------------------------------- #
# Tiling / VMEM-budget selection
# --------------------------------------------------------------------------- #
def _choose_tiling(n_rows, d_model, d_ff, in_bytes, out_bytes, mm_bytes,
                   row_tile):
    d_model_pad = _round_up(d_model, 128)
    d_ff_pad128 = _round_up(d_ff, 128)

    try:
        vmem_cap = int(pltpu.get_tpu_info().vmem_capacity_bytes)
    except Exception:  # pragma: no cover - conservative fallback (v7x size)
        vmem_cap = 64 * 1024 * 1024
    budget = int(0.70 * vmem_cap)

    # Row tile: as big as the budget / data allow (multiple of 16 so bf16
    # activations keep their packed (16,128) sublane tile).
    tm = max(16, (min(row_tile, 512) // 16) * 16)
    n_rows_eff = max(n_rows, 16)                 # tiny inputs: pad rows to 16
    tm = min(tm, max(16, (n_rows_eff // 16) * 16))

    def fixed_bytes(t):
        return (2 * t * d_model_pad * (in_bytes + out_bytes)   # x / out (x2 bufs)
                + 3 * d_model_pad * 4                          # packed LN params
                + t * d_model_pad * 4)                         # f32 accumulator

    def per_kf_bytes(t):
        return (4 * d_model_pad * mm_bytes                     # W1 + W2 (x2 bufs)
                + 8                                            # b1 (x2 bufs, f32)
                + 6 * t)                                       # h (f32 + bf16 copy)

    # Largest d_ff chunk (multiple of 128) that fits the budget; shrink tm if
    # even a 128-wide chunk does not fit.
    while True:
        avail = budget - fixed_bytes(tm)
        kf = (avail // per_kf_bytes(tm)) // 128 * 128
        if kf >= 128 or tm <= 64:
            break
        tm = max(64, (tm // 2 // 16) * 16)
    kf = int(max(128, min(kf, d_ff_pad128)))

    num_k = pl.cdiv(d_ff_pad128, kf)
    d_ff_pad = num_k * kf          # full k blocks -> no OOB garbage feeds the
                                   # reduction (extra columns are zero-padded)

    # v7x has 2 TensorCores: if everything landed in a single row step, split
    # it so the "parallel" axis can be sharded across cores.
    n_row_steps = pl.cdiv(n_rows_eff, tm)
    if n_row_steps == 1 and n_rows_eff >= 128:
        tm = max(64, _round_up(pl.cdiv(n_rows_eff, 2), 16))
        n_row_steps = pl.cdiv(n_rows_eff, tm)

    est = fixed_bytes(tm) + kf * per_kf_bytes(tm)
    vmem_limit = int(min(max(int(1.4 * est) + (2 << 20), 32 * 1024 * 1024),
                         int(0.85 * vmem_cap)))

    return (tm, kf, num_k, d_model_pad, d_ff_pad, n_rows_eff, n_row_steps,
            vmem_limit)


# --------------------------------------------------------------------------- #
# Wrapper
# --------------------------------------------------------------------------- #
def poswise_feed_forward_net(inputs, w1, b1, w2, b2, gamma, beta, *,
                             eps=1e-5, row_tile=256,
                             matmul_dtype=jnp.bfloat16,
                             prepared_params=None):
    """inputs: [B, S, d_model]; w1: [d_ff, d_model, 1]; w2: [d_model, d_ff, 1]."""
    B, S, d_model = inputs.shape
    d_ff = w1.shape[0]
    n_rows = B * S

    in_b = inputs.dtype.itemsize
    out_b = inputs.dtype.itemsize
    mm_b = jnp.dtype(matmul_dtype).itemsize

    (tm, kf, num_k, d_model_pad, d_ff_pad, n_rows_eff, n_row_steps,
     vmem_limit) = _choose_tiling(n_rows, d_model, d_ff, in_b, out_b, mm_b,
                                  row_tile)

    # ---- activations: flatten; pad only when strictly required -------------
    x2d = inputs.reshape(n_rows, d_model)
    if n_rows_eff != n_rows or d_model_pad != d_model:
        x2d = jnp.pad(x2d, ((0, n_rows_eff - n_rows),
                            (0, d_model_pad - d_model)))

    # ---- parameters (transpose / cast / pad; cacheable across calls) -------
    if prepared_params is None:
        prepared_params = prepare_ffn_params(
            w1, b1, w2, b2, gamma, beta,
            d_model_pad=d_model_pad, d_ff_pad=d_ff_pad,
            matmul_dtype=matmul_dtype)
    w1_m, b1_r, w2_m, lnp = prepared_params

    # ---- cost hint ----------------------------------------------------------
    weight_bytes = 2 * d_model_pad * d_ff_pad * mm_b
    weight_stream = weight_bytes * (n_row_steps if num_k > 1 else 1)
    cost = pl.CostEstimate(
        flops=4 * n_rows_eff * d_model_pad * d_ff_pad,
        transcendentals=n_rows_eff,
        bytes_accessed=(n_rows_eff * d_model_pad * (in_b + out_b)
                        + weight_stream + (d_ff_pad + 3 * d_model_pad) * 4),
    )

    grid = (n_row_steps, num_k)

    out2d = pl.pallas_call(
        functools.partial(_ffn_ln_kernel, eps=eps, d_model_true=d_model,
                          mm_dtype=matmul_dtype),
        out_shape=jax.ShapeDtypeStruct((n_rows_eff, d_model_pad), inputs.dtype),
        grid_spec=pltpu.PrefetchScalarGridSpec(
            num_scalar_prefetch=0,
            grid=grid,
            in_specs=[
                pl.BlockSpec((tm, d_model_pad), lambda i, k: (i, 0)),    # x tile
                pl.BlockSpec((d_model_pad, kf), lambda i, k: (0, k)),    # W1 cols
                pl.BlockSpec((1, kf), lambda i, k: (0, k)),              # b1 chunk
                pl.BlockSpec((kf, d_model_pad), lambda i, k: (k, 0)),    # W2 rows
                pl.BlockSpec((3, d_model_pad), lambda i, k: (0, 0),
                             pipeline_mode=pl.Buffered(1)),              # b2/gamma/beta
            ],
            out_specs=pl.BlockSpec((tm, d_model_pad), lambda i, k: (i, 0)),
            scratch_shapes=[pltpu.VMEM((tm, d_model_pad), jnp.float32)],
        ),
        compiler_params=pltpu.CompilerParams(
            dimension_semantics=("parallel", "arbitrary"),
            vmem_limit_bytes=vmem_limit,
        ),
        cost_estimate=cost,
    )(x2d, w1_m, b1_r, w2_m, lnp)

    if n_rows_eff != n_rows or d_model_pad != d_model:
        out2d = out2d[:n_rows, :d_model]
    return out2d.reshape(B, S, d_model)


# --------------------------------------------------------------------------- #
# Demo / correctness check
# --------------------------------------------------------------------------- #
if __name__ == "__main__":
    # small, module-consistent shapes
    batch, seq_len = 2, 8
    d_model, d_ff = 32, 64

    key = jax.random.PRNGKey(0)
    k_x, k_w1, k_b1, k_w2, k_b2 = jax.random.split(key, 5)

    inputs = jax.random.normal(k_x, (batch, seq_len, d_model), jnp.float32)

    # deterministic parameter init (Conv1d weight shape: [out, in, kernel=1])
    w1 = jax.random.normal(k_w1, (d_ff, d_model, 1), jnp.float32) * 0.1
    b1 = jax.random.normal(k_b1, (d_ff,), jnp.float32) * 0.1
    w2 = jax.random.normal(k_w2, (d_model, d_ff, 1), jnp.float32) * 0.1
    b2 = jax.random.normal(k_b2, (d_model,), jnp.float32) * 0.1
    gamma = jnp.ones((d_model,), jnp.float32)   # LayerNorm weight
    beta = jnp.zeros((d_model,), jnp.float32)   # LayerNorm bias

    out = poswise_feed_forward_net(inputs, w1, b1, w2, b2, gamma, beta)
    jax.block_until_ready(out)

    # correctness check against a pure-JAX f32 reference (kernel uses bf16
    # matmul operands with f32 accumulation -> loose tolerance)
    h_ref = jnp.maximum(jnp.einsum("bsd,fd->bsf", inputs, w1[:, :, 0]) + b1, 0.0)
    y_ref = jnp.einsum("bsf,df->bsd", h_ref, w2[:, :, 0]) + b2 + inputs
    mu = jnp.mean(y_ref, axis=-1, keepdims=True)
    var = jnp.mean((y_ref - mu) ** 2, axis=-1, keepdims=True)
    ref = (y_ref - mu) * jax.lax.rsqrt(var + 1e-5) * gamma + beta

    max_err = float(jnp.max(jnp.abs(out - ref)))
    assert out.shape == ref.shape
    assert max_err < 5e-2, f"mismatch vs reference, max_err={max_err}"

    print("KERNEL_OK")
</pallas_src>

<mosaic_0001>
module attributes {stable_mosaic.version = 11 : i64} {
  func.func @_ffn_ln_kernel(%arg0: i32, %arg1: i32, %arg2: memref<16x128xf32, #tpu.memory_space<vmem>>, %arg3: memref<128x128xbf16, #tpu.memory_space<vmem>>, %arg4: memref<1x128xf32, #tpu.memory_space<vmem>>, %arg5: memref<128x128xbf16, #tpu.memory_space<vmem>>, %arg6: memref<3x128xf32, #tpu.memory_space<vmem>>, %arg7: memref<16x128xf32, #tpu.memory_space<vmem>>, %arg8: memref<16x128xf32, #tpu.memory_space<vmem>>) attributes {dimension_semantics = [#tpu.dimension_semantics<parallel>, #tpu.dimension_semantics<arbitrary>], iteration_bounds = array<i64: 1, 1>, scalar_prefetch = 0 : i64, scratch_operands = 1 : i64, tpu.core_type = #tpu.core_type<tc>, window_params = [{transform_indices = @transform_0, window_bounds = array<i64: 16, 128>}, {transform_indices = @transform_1, window_bounds = array<i64: 128, 128>}, {transform_indices = @transform_2, window_bounds = array<i64: 1, 128>}, {transform_indices = @transform_3, window_bounds = array<i64: 128, 128>}, {pipeline_mode = #tpu.pipeline_mode<synchronous>, transform_indices = @transform_4, window_bounds = array<i64: 3, 128>}, {transform_indices = @transform_5, window_bounds = array<i64: 16, 128>}]} {
    %c0 = arith.constant 0 : index
    %c0_0 = arith.constant 0 : index
    %0 = vector.load %arg2[%c0, %c0_0] : memref<16x128xf32, #tpu.memory_space<vmem>>, vector<16x128xf32>
    %1 = arith.truncf %0 : vector<16x128xf32> to vector<16x128xbf16>
    %c0_i32 = arith.constant 0 : i32
    %2 = arith.cmpi eq, %arg1, %c0_i32 : i32
    %3 = arith.extui %2 : i1 to i32
    %c0_i32_1 = arith.constant 0 : i32
    %4 = arith.cmpi ne, %3, %c0_i32_1 : i32
    scf.if %4 {
      %cst_16 = arith.constant 0.000000e+00 : f32
      %21 = vector.broadcast %cst_16 : f32 to vector<16x128xf32>
      %c0_17 = arith.constant 0 : index
      %c0_18 = arith.constant 0 : index
      %22 = vector.load %arg8[%c0_17, %c0_18] : memref<16x128xf32, #tpu.memory_space<vmem>>, vector<16x128xf32>
      tpu.vector_store %arg8[%c0_17, %c0_18], %21 {strides = array<i32>} : memref<16x128xf32, #tpu.memory_space<vmem>>, vector<16x128xf32>,
    } else {
    }
    %c0_2 = arith.constant 0 : index
    %c0_3 = arith.constant 0 : index
    %5 = vector.load %arg3[%c0_2, %c0_3] : memref<128x128xbf16, #tpu.memory_space<vmem>>, vector<128x128xbf16>
    %cst = arith.constant dense<0.000000e+00> : vector<16x128xf32>
    %6 = tpu.matmul %1, %5, %cst {dimension_numbers = #tpu.dot_dimension_numbers<[1], [0], [0], [1], [0, 0, 1, 1], [], []>} : vector<16x128xbf16>, vector<128x128xbf16>, vector<16x128xf32> -> vector<16x128xf32>
    %c0_4 = arith.constant 0 : index
    %c0_5 = arith.constant 0 : index
    %7 = vector.load %arg4[%c0_4, %c0_5] : memref<1x128xf32, #tpu.memory_space<vmem>>, vector<1x128xf32>
    %8 = vector.broadcast %7 : vector<1x128xf32> to vector<16x128xf32>
    %9 = arith.addf %6, %8 : vector<16x128xf32>
    %cst_6 = arith.constant 0.000000e+00 : f32
    %10 = vector.broadcast %cst_6 : f32 to vector<16x128xf32>
    %11 = arith.maximumf %9, %10 : vector<16x128xf32>
    %c0_7 = arith.constant 0 : index
    %c0_8 = arith.constant 0 : index
    %12 = vector.load %arg8[%c0_7, %c0_8] : memref<16x128xf32, #tpu.memory_space<vmem>>, vector<16x128xf32>
    %13 = arith.truncf %11 : vector<16x128xf32> to vector<16x128xbf16>
    %c0_9 = arith.constant 0 : index
    %c0_10 = arith.constant 0 : index
    %14 = vector.load %arg5[%c0_9, %c0_10] : memref<128x128xbf16, #tpu.memory_space<vmem>>, vector<128x128xbf16>
    %cst_11 = arith.constant dense<0.000000e+00> : vector<16x128xf32>
    %15 = tpu.matmul %13, %14, %cst_11 {dimension_numbers = #tpu.dot_dimension_numbers<[1], [0], [0], [1], [0, 0, 1, 1], [], []>} : vector<16x128xbf16>, vector<128x128xbf16>, vector<16x128xf32> -> vector<16x128xf32>
    %16 = arith.addf %12, %15 : vector<16x128xf32>
    %c0_12 = arith.constant 0 : index
    %c0_13 = arith.constant 0 : index
    %17 = vector.load %arg8[%c0_12, %c0_13] : memref<16x128xf32, #tpu.memory_space<vmem>>, vector<16x128xf32>
    tpu.vector_store %arg8[%c0_12, %c0_13], %16 {strides = array<i32>} : memref<16x128xf32, #tpu.memory_space<vmem>>, vector<16x128xf32>,
    %c0_i32_14 = arith.constant 0 : i32
    %18 = arith.cmpi eq, %arg1, %c0_i32_14 : i32
    %19 = arith.extui %18 : i1 to i32
    %c0_i32_15 = arith.constant 0 : i32
    %20 = arith.cmpi ne, %19, %c0_i32_15 : i32
    scf.if %20 {
      %c0_16 = arith.constant 0 : index
      %c0_17 = arith.constant 0 : index
      %21 = vector.load %arg6[%c0_16, %c0_17] : memref<3x128xf32, #tpu.memory_space<vmem>>, vector<3x128xf32>
      %22 = vector.extract_strided_slice %21 {offsets = [0, 0], sizes = [1, 128], strides = [1, 1]} : vector<3x128xf32> to vector<1x128xf32>
      %23 = vector.extract_strided_slice %21 {offsets = [1, 0], sizes = [1, 128], strides = [1, 1]} : vector<3x128xf32> to vector<1x128xf32>
      %24 = vector.extract_strided_slice %21 {offsets = [2, 0], sizes = [1, 128], strides = [1, 1]} : vector<3x128xf32> to vector<1x128xf32>
      %c0_18 = arith.constant 0 : index
      %c0_19 = arith.constant 0 : index
      %25 = vector.load %arg8[%c0_18, %c0_19] : memref<16x128xf32, #tpu.memory_space<vmem>>, vector<16x128xf32>
      %26 = vector.broadcast %22 : vector<1x128xf32> to vector<16x128xf32>
      %27 = arith.addf %25, %26 : vector<16x128xf32>
      %28 = arith.addf %27, %0 : vector<16x128xf32>
      %29 = tpu.iota {dimensions = array<i32: 1>} : vector<1x128xi32>
      %c32_i32 = arith.constant 32 : i32
      %30 = vector.broadcast %c32_i32 : i32 to vector<1x128xi32>
      %31 = arith.cmpi slt, %29, %30 : vector<1x128xi32>
      %cst_20 = arith.constant dense<0.000000e+00> : vector<16xf32>
      %32 = vector.multi_reduction <add>, %28, %cst_20 [1] : vector<16x128xf32> to vector<16xf32>
      %33 = vector.shape_cast %32 : vector<16xf32> to vector<16x1xf32>
      %cst_21 = arith.constant 3.125000e-02 : f32
      %34 = vector.broadcast %cst_21 : f32 to vector<16x1xf32>
      %35 = arith.mulf %33, %34 : vector<16x1xf32>
      %36 = vector.broadcast %35 : vector<16x1xf32> to vector<16x128xf32>
      %37 = arith.subf %28, %36 : vector<16x128xf32>
      %cst_22 = arith.constant 0.000000e+00 : f32
      %38 = vector.shape_cast %31 : vector<1x128xi1> to vector<1x128xi1>
      %39 = vector.broadcast %38 : vector<1x128xi1> to vector<16x128xi1>
      %40 = vector.broadcast %cst_22 : f32 to vector<16x128xf32>
      %41 = arith.select %39, %37, %40 : vector<16x128xi1>, vector<16x128xf32>
      %42 = arith.mulf %41, %41 : vector<16x128xf32>
      %cst_23 = arith.constant dense<0.000000e+00> : vector<16xf32>
      %43 = vector.multi_reduction <add>, %42, %cst_23 [1] : vector<16x128xf32> to vector<16xf32>
      %44 = vector.shape_cast %43 : vector<16xf32> to vector<16x1xf32>
      %cst_24 = arith.constant 3.125000e-02 : f32
      %45 = vector.broadcast %cst_24 : f32 to vector<16x1xf32>
      %46 = arith.mulf %44, %45 : vector<16x1xf32>
      %cst_25 = arith.constant 9.99999974E-6 : f32
      %47 = vector.broadcast %cst_25 : f32 to vector<16x1xf32>
      %48 = arith.addf %46, %47 : vector<16x1xf32>
      %49 = math.rsqrt %48 : vector<16x1xf32>
      %50 = vector.broadcast %49 : vector<16x1xf32> to vector<16x128xf32>
      %51 = arith.mulf %37, %50 : vector<16x128xf32>
      %52 = vector.broadcast %23 : vector<1x128xf32> to vector<16x128xf32>
      %53 = arith.mulf %51, %52 : vector<16x128xf32>
      %54 = vector.broadcast %24 : vector<1x128xf32> to vector<16x128xf32>
      %55 = arith.addf %53, %54 : vector<16x128xf32>
      %c0_26 = arith.constant 0 : index
      %c0_27 = arith.constant 0 : index
      %56 = vector.load %arg7[%c0_26, %c0_27] : memref<16x128xf32, #tpu.memory_space<vmem>>, vector<16x128xf32>
      tpu.vector_store %arg7[%c0_26, %c0_27], %55 {strides = array<i32>} : memref<16x128xf32, #tpu.memory_space<vmem>>, vector<16x128xf32>,
    } else {
    }
    return
  }
  func.func @transform_0(%arg0: i32, %arg1: i32) -> (i32, i32) {
    %c0_i32 = arith.constant 0 : i32
    %c0_i32_0 = arith.constant 0 : i32
    return %arg0, %c0_i32 : i32, i32
  }
  func.func @transform_1(%arg0: i32, %arg1: i32) -> (i32, i32) {
    %c0_i32 = arith.constant 0 : i32
    %c0_i32_0 = arith.constant 0 : i32
    return %c0_i32, %arg1 : i32, i32
  }
  func.func @transform_2(%arg0: i32, %arg1: i32) -> (i32, i32) {
    %c0_i32 = arith.constant 0 : i32
    %c0_i32_0 = arith.constant 0 : i32
    return %c0_i32, %arg1 : i32, i32
  }
  func.func @transform_3(%arg0: i32, %arg1: i32) -> (i32, i32) {
    %c0_i32 = arith.constant 0 : i32
    %c0_i32_0 = arith.constant 0 : i32
    return %arg1, %c0_i32 : i32, i32
  }
  func.func @transform_4(%arg0: i32, %arg1: i32) -> (i32, i32) {
    %c0_i32 = arith.constant 0 : i32
    %c0_i32_0 = arith.constant 0 : i32
    %c0_i32_1 = arith.constant 0 : i32
    return %c0_i32, %c0_i32_0 : i32, i32
  }
  func.func @transform_5(%arg0: i32, %arg1: i32) -> (i32, i32) {
    %c0_i32 = arith.constant 0 : i32
    %c0_i32_0 = arith.constant 0 : i32
    return %arg0, %c0_i32 : i32, i32
  }
}

</mosaic_0001>

<llo_original>
// kernel: tpu_custom_call.1
$region0: #{tpu_custom_call.1}
  #allocation0 [shape = 'u32[]', space=smem, size = 0x4, offset = 0x4, fixed_abs, tag = 'smem constant byte address 0x4 - core index']
  #allocation1 [shape = 'u32[144,128]{1,0:T(1,128)}', space=vmem, size = 0x12000, scoped, tag = 'internal scratch']
  #allocation2 [shape = 'f32[16,128]{1,0:T(8,128)}', space=vmem, size = 0x2000, scoped, tag = 'scratch operand']
  %s0 = inlined_call_operand.hbm [shape: f32[16,128], index: 0, kind: input, shape index: {}]
  %s1 = inlined_call_operand.hbm [shape: bf16[128,128], index: 1, kind: input, shape index: {}]
  %s2 = inlined_call_operand.vmem [shape: f32[1,128], index: 2, kind: input, shape index: {}]
  %s3 = inlined_call_operand.hbm [shape: bf16[128,128], index: 3, kind: input, shape index: {}]
  %s4 = inlined_call_operand.vmem [shape: f32[3,128], index: 4, kind: input, shape index: {}]
  %s5 = inlined_call_operand.hbm [shape: f32[16,128], index: 5, kind: output, shape index: {}]
  %s6 = sld [smem:[#allocation0]]
  $region50: #{tpu_custom_call.1} parent=0
    _
  %s8 = ssub.s32 1, %s6
  %s9 = scalar_select 0, %s8, %s6
  $region1: #{tpu_custom_call.1} parent=0
    #allocation3 [shape = 'u8[8192]{0}', space=vmem, size = 0x2000, scoped, tag = 'input window, operand 0, single buffered']
    #allocation4 [shape = 's32[1]{0}', space=sflag, size = 0x4, scoped, tag = 'scoped memory for tpu_custom_call.1']
    #allocation5 [shape = 's32[1]{0}', space=sflag, size = 0x4, scoped, tag = 'scoped memory for tpu_custom_call.1']
    #allocation6 [shape = 'u8[32768]{0}', space=vmem, size = 0x8000, scoped, tag = 'input window, operand 1, single buffered']
    #allocation7 [shape = 's32[1]{0}', space=sflag, size = 0x4, scoped, tag = 'scoped memory for tpu_custom_call.1']
    #allocation8 [shape = 'u8[32768]{0}', space=vmem, size = 0x8000, scoped, tag = 'input window, operand 3, single buffered']
    #allocation9 [shape = 'u8[8192]{0}', space=vmem, size = 0x2000, scoped, tag = 'output window, operand 0, single buffered']
    %10 = vsyncpa [#allocation4], 0
    %11 = vsyncpa [#allocation7], 0
    %12 = vsyncpa [#allocation5], 0
    // Predicated region
    $region2: #{tpu_custom_call.1} parent=1 // pred_check
      _
    $region3: #{tpu_custom_call.1} parent=1 // pred_check_branch
      %14 = sbr.rel (0) target = $region5
    $region4: #{tpu_custom_call.1} parent=1 // pred_region
      %s16 = ssub.s32 256, 256
      %17 = vsyncadd [#allocation4], %s16
      %s18 = sshll.u32 [#allocation3], 4
      %s19 = int_to_ptr.vmem [resolvable:$true] %s18
      %24 = dma.hbm_to_vmem [thread:$0]  %s0, 256, %s19, [#allocation4], 128, 128, 8
    $region5: #{tpu_custom_call.1} parent=1 // pred_fallthru
      _
    // Predicated region
    $region6: #{tpu_custom_call.1} parent=1 // pred_check
      _
    $region7: #{tpu_custom_call.1} parent=1 // pred_check_branch
      %26 = sbr.rel (0) target = $region9
    $region8: #{tpu_custom_call.1} parent=1 // pred_region
      %s28 = ssub.s32 1024, 1024
      %29 = vsyncadd [#allocation7], %s28
      %s30 = sshll.u32 [#allocation6], 4
      %s31 = int_to_ptr.vmem [resolvable:$true] %s30
      %36 = dma.hbm_to_vmem [thread:$0]  %s1, 1024, %s31, [#allocation7], 64, 64, 4
    $region9: #{tpu_custom_call.1} parent=1 // pred_fallthru
      _
    // Predicated region
    $region10: #{tpu_custom_call.1} parent=1 // pred_check
      _
    $region11: #{tpu_custom_call.1} parent=1 // pred_check_branch
      %38 = sbr.rel (0) target = $region13
    $region12: #{tpu_custom_call.1} parent=1 // pred_region
      _
    $region13: #{tpu_custom_call.1} parent=1 // pred_fallthru
      _
    // Predicated region
    $region14: #{tpu_custom_call.1} parent=1 // pred_check
      _
    $region15: #{tpu_custom_call.1} parent=1 // pred_check_branch
      %40 = sbr.rel (0) target = $region17
    $region16: #{tpu_custom_call.1} parent=1 // pred_region
      %s42 = ssub.s32 1024, 1024
      %43 = vsyncadd [#allocation7], %s42
      %s44 = sshll.u32 [#allocation8], 4
      %s45 = int_to_ptr.vmem [resolvable:$true] %s44
      %50 = dma.hbm_to_vmem [thread:$0]  %s3, 1024, %s45, [#allocation7], 64, 64, 4
    $region17: #{tpu_custom_call.1} parent=1 // pred_fallthru
      _
    // Predicated region
    $region18: #{tpu_custom_call.1} parent=1 // pred_check
      _
    $region19: #{tpu_custom_call.1} parent=1 // pred_check_branch
      %52 = sbr.rel (0) target = $region21
    $region20: #{tpu_custom_call.1} parent=1 // pred_region
      _
    $region21: #{tpu_custom_call.1} parent=1 // pred_fallthru
      _
    // Predicated region
    $region22: #{tpu_custom_call.1} parent=1 // pred_check
      _
    $region23: #{tpu_custom_call.1} parent=1 // pred_check_branch
      %54 = sbr.rel (0) target = $region25
    $region24: #{tpu_custom_call.1} parent=1 // pred_region
      %55 = dma.done [#allocation4], 256
    $region25: #{tpu_custom_call.1} parent=1 // pred_fallthru
      _
    // Predicated region
    $region26: #{tpu_custom_call.1} parent=1 // pred_check
      _
    $region27: #{tpu_custom_call.1} parent=1 // pred_check_branch
      %57 = sbr.rel (0) target = $region29
    $region28: #{tpu_custom_call.1} parent=1 // pred_region
      %58 = dma.done [#allocation7], 1024
    $region29: #{tpu_custom_call.1} parent=1 // pred_fallthru
      _
    // Predicated region
    $region30: #{tpu_custom_call.1} parent=1 // pred_check
      _
    $region31: #{tpu_custom_call.1} parent=1 // pred_check_branch
      %60 = sbr.rel (0) target = $region33
    $region32: #{tpu_custom_call.1} parent=1 // pred_region
      %61 = dma.done [#allocation7], 1024
    $region33: #{tpu_custom_call.1} parent=1 // pred_fallthru
      _
    %v63 = vld [vmem:[#allocation3] sm:$0xff]
    %v64 = vld [vmem:[#allocation3 + $0x8] sm:$0xff]
    %v65 = vpack.c.bf16 %v64, %v63
    %p66 = scmp.eq.s32.totalorder 0, 0
    // Predicated region
    $region34: #{tpu_custom_call.1} parent=1 // pred_check
      %p67 = pneg %p66
    $region35: #{tpu_custom_call.1} parent=1 // pred_check_branch
      %69 = sbr.rel (%p67) target = $region37
    $region36: #{tpu_custom_call.1} parent=1 // pred_region
      %70 = vst [vmem:[#allocation2] sm:$0xff] 0.0
      %71 = vst [vmem:[#allocation2 + $0x8] sm:$0xff] 0.0
    $region37: #{tpu_custom_call.1} parent=1 // pred_fallthru
      _
    %v72 = vld [vmem:[#allocation6] sm:$0xf]
    %v73 = vld [vmem:[#allocation6 + $0x4] sm:$0xf]
    %v74 = vld [vmem:[#allocation6 + $0x8] sm:$0xf]
    %v75 = vld [vmem:[#allocation6 + $0xc] sm:$0xf]
    %v76 = vld [vmem:[#allocation6 + $0x10] sm:$0xf]
    %v77 = vld [vmem:[#allocation6 + $0x14] sm:$0xf]
    %v78 = vld [vmem:[#allocation6 + $0x18] sm:$0xf]
    %v79 = vld [vmem:[#allocation6 + $0x1c] sm:$0xf]
    %v80 = vld [vmem:[#allocation6 + $0x20] sm:$0xf]
    %v81 = vld [vmem:[#allocation6 + $0x24] sm:$0xf]
    %v82 = vld [vmem:[#allocation6 + $0x28] sm:$0xf]
    %v83 = vld [vmem:[#allocation6 + $0x2c] sm:$0xf]
    %v84 = vld [vmem:[#allocation6 + $0x30] sm:$0xf]
    %v85 = vld [vmem:[#allocation6 + $0x34] sm:$0xf]
    %v86 = vld [vmem:[#allocation6 + $0x38] sm:$0xf]
    %v87 = vld [vmem:[#allocation6 + $0x3c] sm:$0xf]
    %v88 = vld [vmem:[%s2] sm:$0x1]
    %v90 = vlaneseq
    %v91 = vshrl.u32 %v90, 7
    %v92 = vsub.s32 0, %v91
    %v93 = vrot.slane %v88, %v92
    %v111 = vunpack.c.l.b16 %v72
    %v112 = vunpack.c.l.b16 %v73
    %v113 = vunpack.c.l.b16 %v74
    %v114 = vunpack.c.l.b16 %v75
    %v115 = vunpack.c.l.b16 %v76
    %v116 = vunpack.c.l.b16 %v77
    %v117 = vunpack.c.l.b16 %v78
    %v118 = vunpack.c.l.b16 %v79
    %v119 = vunpack.c.l.b16 %v80
    %v120 = vunpack.c.l.b16 %v81
    %v121 = vunpack.c.l.b16 %v82
    %v122 = vunpack.c.l.b16 %v83
    %v123 = vunpack.c.l.b16 %v84
    %v124 = vunpack.c.l.b16 %v85
    %v125 = vunpack.c.l.b16 %v86
    %v126 = vunpack.c.l.b16 %v87
    %v127 = vpack.c.b16 %v112, %v111
    %v128 = vpack.c.b16 %v114, %v113
    %v129 = vpack.c.b16 %v116, %v115
    %v130 = vpack.c.b16 %v118, %v117
    %v131 = vpack.c.b16 %v120, %v119
    %v132 = vpack.c.b16 %v122, %v121
    %v133 = vpack.c.b16 %v124, %v123
    %v134 = vpack.c.b16 %v126, %v125
    %143 = vmatprep.subr.bf16.mxu0 0
    %144 = vmatpush1.bf16.msra.mxu0 %v127
    %145 = vmatprep.subr.bf16.mxu0 0
    %146 = vmatpush1.bf16.msra.mxu0 %v128
    %147 = vmatprep.subr.bf16.mxu0 0
    %148 = vmatpush1.bf16.msra.mxu0 %v129
    %149 = vmatprep.subr.bf16.mxu0 0
    %150 = vmatpush1.bf16.msra.mxu0 %v130
    %151 = vmatprep.subr.bf16.mxu0 0
    %152 = vmatpush1.bf16.msra.mxu0 %v131
    %153 = vmatprep.subr.bf16.mxu0 0
    %154 = vmatpush1.bf16.msra.mxu0 %v132
    %155 = vmatprep.subr.bf16.mxu0 0
    %156 = vmatpush1.bf16.msra.mxu0 %v133
    %157 = vmatprep.subr.bf16.mxu0 0
    %158 = vmatpush1.bf16.msra.mxu0 %v134
    %159 = vmatprep.subr.bf16.mxu0 0
    %160 = vmatpush1.bf16.msra.mxu0 0
    %161 = vmatprep.subr.bf16.mxu0 0
    %162 = vmatpush1.bf16.msra.mxu0 0
    %163 = vmatprep.subr.bf16.mxu0 0
    %164 = vmatpush1.bf16.msra.mxu0 0
    %165 = vmatprep.subr.bf16.mxu0 0
    %166 = vmatpush1.bf16.msra.mxu0 0
    %167 = vmatprep.subr.bf16.mxu0 0
    %168 = vmatpush1.bf16.msra.mxu0 0
    %169 = vmatprep.subr.bf16.mxu0 0
    %170 = vmatpush1.bf16.msra.mxu0 0
    %171 = vmatprep.subr.bf16.mxu0 0
    %172 = vmatpush1.bf16.msra.mxu0 0
    %173 = vmatprep.subr.bf16.mxu0 0
    %174 = vmatpush1.bf16.msra.mxu0 0
    %175 = vmatprep.mubr.bf16.mxu0 0
    %176 = vmatmul.mubr.bf16.gmra.mrb[0].mxu0 %v65
    %v177 = vpop.f32.mrb[0].mxu0
    %v178 = vadd.f32 %v93, %v177
    %v179 = vpop.f32.mrb[0].mxu0
    %v180 = vpop.f32.mrb[0].mxu0
    %v181 = vadd.f32 %v93, %v180
    %v182 = vpop.f32.mrb[0].mxu0
    %183 = vdwg.mxu0
    %v184 = vmax.f32 %v178, 0.0
    %v185 = vmax.f32 %v181, 0.0
    %v186 = vld [vmem:[#allocation2] sm:$0xff]
    %v187 = vld [vmem:[#allocation2 + $0x8] sm:$0xff]
    %v188 = vpack.c.bf16 %v185, %v184
    %v189 = vld [vmem:[#allocation8] sm:$0xf]
    %v190 = vld [vmem:[#allocation8 + $0x4] sm:$0xf]
    %v191 = vld [vmem:[#allocation8 + $0x8] sm:$0xf]
    %v192 = vld [vmem:[#allocation8 + $0xc] sm:$0xf]
    %v193 = vld [vmem:[#allocation8 + $0x10] sm:$0xf]
    %v194 = vld [vmem:[#allocation8 + $0x14] sm:$0xf]
    %v195 = vld [vmem:[#allocation8 + $0x18] sm:$0xf]
    %v196 = vld [vmem:[#allocation8 + $0x1c] sm:$0xf]
    %v197 = vld [vmem:[#allocation8 + $0x20] sm:$0xf]
    %v198 = vld [vmem:[#allocation8 + $0x24] sm:$0xf]
    %v199 = vld [vmem:[#allocation8 + $0x28] sm:$0xf]
    %v200 = vld [vmem:[#allocation8 + $0x2c] sm:$0xf]
    %v201 = vld [vmem:[#allocation8 + $0x30] sm:$0xf]
    %v202 = vld [vmem:[#allocation8 + $0x34] sm:$0xf]
    %v203 = vld [vmem:[#allocation8 + $0x38] sm:$0xf]
    %v204 = vld [vmem:[#allocation8 + $0x3c] sm:$0xf]
    %v221 = vunpack.c.l.b16 %v189
    %v222 = vunpack.c.l.b16 %v190
    %v223 = vunpack.c.l.b16 %v191
    %v224 = vunpack.c.l.b16 %v192
    %v225 = vunpack.c.l.b16 %v193
    %v226 = vunpack.c.l.b16 %v194
    %v227 = vunpack.c.l.b16 %v195
    %v228 = vunpack.c.l.b16 %v196
    %v229 = vunpack.c.l.b16 %v197
    %v230 = vunpack.c.l.b16 %v198
    %v231 = vunpack.c.l.b16 %v199
    %v232 = vunpack.c.l.b16 %v200
    %v233 = vunpack.c.l.b16 %v201
    %v234 = vunpack.c.l.b16 %v202
    %v235 = vunpack.c.l.b16 %v203
    %v236 = vunpack.c.l.b16 %v204
    %v237 = vpack.c.b16 %v222, %v221
    %v238 = vpack.c.b16 %v224, %v223
    %v239 = vpack.c.b16 %v226, %v225
    %v240 = vpack.c.b16 %v228, %v227
    %v241 = vpack.c.b16 %v230, %v229
    %v242 = vpack.c.b16 %v232, %v231
    %v243 = vpack.c.b16 %v234, %v233
    %v244 = vpack.c.b16 %v236, %v235
    %253 = vmatprep.subr.bf16.mxu0 0
    %254 = vmatpush1.bf16.msra.mxu0 %v237
    %255 = vmatprep.subr.bf16.mxu0 0
    %256 = vmatpush1.bf16.msra.mxu0 %v238
    %257 = vmatprep.subr.bf16.mxu0 0
    %258 = vmatpush1.bf16.msra.mxu0 %v239
    %259 = vmatprep.subr.bf16.mxu0 0
    %260 = vmatpush1.bf16.msra.mxu0 %v240
    %261 = vmatprep.subr.bf16.mxu0 0
    %262 = vmatpush1.bf16.msra.mxu0 %v241
    %263 = vmatprep.subr.bf16.mxu0 0
    %264 = vmatpush1.bf16.msra.mxu0 %v242
    %265 = vmatprep.subr.bf16.mxu0 0
    %266 = vmatpush1.bf16.msra.mxu0 %v243
    %267 = vmatprep.subr.bf16.mxu0 0
    %268 = vmatpush1.bf16.msra.mxu0 %v244
    %269 = vmatprep.subr.bf16.mxu0 0
    %270 = vmatpush1.bf16.msra.mxu0 0
    %271 = vmatprep.subr.bf16.mxu0 0
    %272 = vmatpush1.bf16.msra.mxu0 0
    %273 = vmatprep.subr.bf16.mxu0 0
    %274 = vmatpush1.bf16.msra.mxu0 0
    %275 = vmatprep.subr.bf16.mxu0 0
    %276 = vmatpush1.bf16.msra.mxu0 0
    %277 = vmatprep.subr.bf16.mxu0 0
    %278 = vmatpush1.bf16.msra.mxu0 0
    %279 = vmatprep.subr.bf16.mxu0 0
    %280 = vmatpush1.bf16.msra.mxu0 0
    %281 = vmatprep.subr.bf16.mxu0 0
    %282 = vmatpush1.bf16.msra.mxu0 0
    %283 = vmatprep.subr.bf16.mxu0 0
    %284 = vmatpush1.bf16.msra.mxu0 0
    %285 = vmatprep.mubr.bf16.mxu0 0
    %286 = vmatmul.mubr.bf16.gmra.mrb[0].mxu0 %v188
    %v287 = vpop.f32.mrb[0].mxu0
    %v288 = vadd.f32 0.0, %v287
    %v289 = vpop.f32.mrb[0].mxu0
    %v290 = vpop.f32.mrb[0].mxu0
    %v291 = vadd.f32 0.0, %v290
    %v292 = vpop.f32.mrb[0].mxu0
    %293 = vdwg.mxu0
    %v294 = vadd.f32 %v186, %v288
    %v295 = vadd.f32 %v187, %v291
    %296 = vst [vmem:[#allocation2] sm:$0xff] %v294
    %297 = vst [vmem:[#allocation2 + $0x8] sm:$0xff] %v295
    // Predicated region
    $region38: #{tpu_custom_call.1} parent=1 // pred_check
      %p298 = pneg %p66
    $region39: #{tpu_custom_call.1} parent=1 // pred_check_branch
      %300 = sbr.rel (%p298) target = $region41
    $region40: #{tpu_custom_call.1} parent=1 // pred_region
      %v301 = vld [vmem:[%s4] sm:$0x7]
      %v302 = vld [vmem:[#allocation2] sm:$0xff]
      %v303 = vld [vmem:[#allocation2 + $0x8] sm:$0xff]
      %v304 = vlaneseq
      %v305 = vshrl.u32 %v304, 7
      %v306 = vsub.s32 0, %v305
      %v307 = vrot.slane %v301, %v306
      %v308 = vadd.f32 %v302, %v307
      %v309 = vadd.f32 %v303, %v307
      %v310 = vadd.f32 %v308, %v63
      %v311 = vadd.f32 %v309, %v64
      %v312 = vlaneseq
      %v313 = vand.u32 %v312, 127
      %vm314 = vcmp.lt.s32.totalorder %v313, 32
      %315 = vadd.xlane.f32.xlu0 %v310
      %v316 = vpop.xlane.xlu0 %315
      %317 = vadd.xlane.f32.xlu0 %v311
      %v318 = vpop.xlane.xlu0 %317
      %v319 = vmul.f32 %v316, 0.03125
      %v320 = vmul.f32 %v318, 0.03125
      %v321 = vsub.f32 %v310, %v319
      %v322 = vsub.f32 %v311, %v320
      %v323 = vsel %vm314, 1, 0
      %vm324 = vcmp.eq.s32.totalorder %v323, 1
      %v325 = vsel %vm324, %v321, 0.0
      %v326 = vsel %vm324, %v322, 0.0
      %v327 = vmul.f32 %v325, %v325
      %v328 = vmul.f32 %v326, %v326
      %329 = vadd.xlane.f32.xlu0 %v327
      %v330 = vpop.xlane.xlu0 %329
      %331 = vadd.xlane.f32.xlu0 %v328
      %v332 = vpop.xlane.xlu0 %331
      %v333 = vmul.f32 %v330, 0.03125
      %v334 = vmul.f32 %v332, 0.03125
      %v335 = vadd.f32 %v333, 1e-05
      %v336 = vadd.f32 %v334, 1e-05
      %v337 = vrsqrt.pop %v335
      %v338 = vrsqrt.pop %v336
      %v339 = vmul.f32 %v321, %v337
      %v340 = vmul.f32 %v322, %v338
      %v341 = vlaneseq
      %v342 = vshrl.u32 %v341, 7
      %v343 = vsub.s32 1, %v342
      %v344 = vrot.slane %v301, %v343
      %v345 = vmul.f32 %v339, %v344
      %v346 = vmul.f32 %v340, %v344
      %v347 = vlaneseq
      %v348 = vshrl.u32 %v347, 7
      %v349 = vsub.s32 2, %v348
      %v350 = vrot.slane %v301, %v349
      %v351 = vadd.f32 %v345, %v350
      %v352 = vadd.f32 %v346, %v350
      %353 = vst [vmem:[#allocation9] sm:$0xff] %v351
      %354 = vst [vmem:[#allocation9 + $0x8] sm:$0xff] %v352
    $region41: #{tpu_custom_call.1} parent=1 // pred_fallthru
      _
    // Predicated region
    $region42: #{tpu_custom_call.1} parent=1 // pred_check
      _
    $region43: #{tpu_custom_call.1} parent=1 // pred_check_branch
      %356 = sbr.rel (0) target = $region45
    $region44: #{tpu_custom_call.1} parent=1 // pred_region
      %s358 = ssub.s32 256, 256
      %359 = vsyncadd [#allocation5], %s358
      %s360 = sshll.u32 [#allocation9], 4
      %s361 = int_to_ptr.vmem [resolvable:$true] %s360
      %366 = dma.vmem_to_hbm [thread:$0]  %s361, 256, %s5, [#allocation5], 128, 128, 8
    $region45: #{tpu_custom_call.1} parent=1 // pred_fallthru
      _
    // Predicated region
    $region46: #{tpu_custom_call.1} parent=1 // pred_check
      _
    $region47: #{tpu_custom_call.1} parent=1 // pred_check_branch
      %368 = sbr.rel (0) target = $region49
    $region48: #{tpu_custom_call.1} parent=1 // pred_region
      %369 = dma.done [#allocation5], 256
    $region49: #{tpu_custom_call.1} parent=1 // pred_fallthru
      _
    %370 = vsyncpa [#allocation4], 1
    %371 = vsyncpa [#allocation7], 1
    %372 = vsyncpa [#allocation5], 1

</llo_original>
